<compile_context>
chip_gen: v7x
topology: tpu7x:2x2x1
jax: 0.10.0
libtpu: 0.0.40
codegen_flags: <defaults>
</compile_context>

<pallas_src>
import functools

import jax
import jax.numpy as jnp
from jax import lax
from jax.experimental import pallas as pl
from jax.experimental.pallas import tpu as pltpu

_BN_EPS = 1e-5
_LANE = 128
_SUBLANE = 8
_TILE_B = 256          # max batch rows per grid tile


def _round_up(n, m):
    return ((n + m - 1) // m) * m


def _bucket_batch(b):
    """Padded batch size (bucketed) and batch tile size."""
    if b <= _TILE_B:
        bp = max(_SUBLANE, pl.next_power_of_2(b))
        return bp, bp
    bp = _round_up(b, _TILE_B)
    return bp, _TILE_B


def _actor_kernel(true_b_ref, x_ref, w1_ref, w2_ref, wmu_ref, vec_ref,
                  o_ref, stats_ref, *, f1p, f2p, ap, eps):
    """Grid = (2 phases, num_batch_tiles).

    true_b_ref : (1,) int32 SMEM scalar-prefetch -- true (unpadded) batch size
    x_ref      : (TB, n_in_p)  matmul dtype (bf16 default), padded rows are zero
    w1_ref     : (n_in_p, f1p) matmul dtype, zero padded
    w2_ref     : (f1p, f2p)    matmul dtype
    wmu_ref    : (f2p, ap)     matmul dtype
    vec_ref    : (8, wmax) f32 slab; rows: 0=gamma1 1=beta1 2=b2 3=bmu  (b1 is BN-inert)
    o_ref      : (TB, ap)  f32
    stats_ref  : (2, f1p)  f32 VMEM scratch; row 0 = sum(h1), row 1 = sum(h1*h1)
    """
    phase = pl.program_id(0)
    tile = pl.program_id(1)
    mm = w1_ref.dtype

    @pl.when(phase == 0)
    def _():
        # Phase 0: accumulate per-column BatchNorm statistics.
        @pl.when(tile == 0)
        def _():
            stats_ref[...] = jnp.zeros_like(stats_ref)
        h1 = jnp.dot(x_ref[...], w1_ref[...],
                     preferred_element_type=jnp.float32)          # (TB, f1p) f32
        # Padded rows of x are zero and there is no bias, so padded rows of h1 are
        # exactly zero -> no row mask needed for the reductions.
        stats_ref[0:1, :] = stats_ref[0:1, :] + jnp.sum(h1, axis=0, keepdims=True)
        stats_ref[1:2, :] = stats_ref[1:2, :] + jnp.sum(h1 * h1, axis=0, keepdims=True)

    @pl.when(phase == 1)
    def _():
        # Phase 1: normalize (batch stats over the true batch size) + fc2 + mu.
        vec = vec_ref[...]
        g1 = vec[0:1, :f1p]
        be1 = vec[1:2, :f1p]
        b2 = vec[2:3, :f2p]
        bmu = vec[3:4, :ap]

        inv_b = jnp.float32(1.0) / true_b_ref[0].astype(jnp.float32)
        mean = stats_ref[0:1, :] * inv_b
        var = jnp.maximum(stats_ref[1:2, :] * inv_b - mean * mean, 0.0)
        scale = lax.rsqrt(var + eps) * g1                          # gamma folded in
        shift = be1 - mean * scale

        h1 = jnp.dot(x_ref[...], w1_ref[...],
                     preferred_element_type=jnp.float32)           # recompute fc1 tile
        h1 = jnp.maximum(h1 * scale + shift, 0.0)                  # bn1 + relu

        h2 = jnp.dot(h1.astype(mm), w2_ref[...],
                     preferred_element_type=jnp.float32) + b2      # fc2
        h2 = jnp.maximum(h2, 0.0)

        out = jnp.dot(h2.astype(mm), wmu_ref[...],
                      preferred_element_type=jnp.float32) + bmu    # mu
        o_ref[...] = jnp.tanh(out)


def pack_actor_params(params, matmul_dtype=jnp.bfloat16):
    """One-time packing: lane-pad weights, pack the small per-layer vectors in one slab.

    matmul_dtype defaults to bf16 (MXU-native on v5e/v6e/v7x); accumulation and all
    BN/ReLU/tanh math stay f32 inside the kernel. Pass jnp.float32 for exact f32 matmuls.
    """
    w1, w2, wmu = params["w1"], params["w2"], params["wmu"]
    n_in, f1 = w1.shape
    f2 = w2.shape[1]
    a = wmu.shape[1]

    n_in_p = _round_up(n_in, _LANE)
    f1p = _round_up(f1, _LANE)
    f2p = _round_up(f2, _LANE)
    ap = _round_up(a, _LANE)
    wmax = max(f1p, f2p, ap)

    f32 = jnp.float32
    w1p = jnp.zeros((n_in_p, f1p), f32).at[:n_in, :f1].set(w1).astype(matmul_dtype)
    w2p = jnp.zeros((f1p, f2p), f32).at[:f1, :f2].set(w2).astype(matmul_dtype)
    wmup = jnp.zeros((f2p, ap), f32).at[:f2, :a].set(wmu).astype(matmul_dtype)

    # NOTE: fc1's bias b1 is intentionally NOT packed -- a per-column constant added
    # before training-mode BatchNorm cancels out of (h1 - mean(h1)).
    vec = jnp.zeros((_SUBLANE, wmax), f32)
    vec = vec.at[0, :f1].set(params["gamma1"].reshape(-1))
    vec = vec.at[1, :f1].set(params["beta1"].reshape(-1))
    vec = vec.at[2, :f2].set(params["b2"].reshape(-1))
    vec = vec.at[3, :a].set(params["bmu"].reshape(-1))

    return {
        "w1": w1p, "w2": w2p, "wmu": wmup, "vec": vec,
        "n_inputs": n_in, "n_in_pad": n_in_p,
        "f1_pad": f1p, "f2_pad": f2p, "a_pad": ap, "wmax": wmax,
        "n_actions": a, "mm_name": jnp.dtype(matmul_dtype).name,
    }


@functools.lru_cache(maxsize=None)
def _build_forward(b, n_in, n_in_p, f1p, f2p, ap, wmax, n_actions, mm_name):
    """Builds a jitted pad -> pallas_call -> slice function for one batch bucket."""
    mm = jnp.dtype(mm_name)
    itemsize = mm.itemsize
    bp, tb = _bucket_batch(b)
    nb = bp // tb

    kernel = functools.partial(_actor_kernel, f1p=f1p, f2p=f2p, ap=ap, eps=_BN_EPS)

    grid_spec = pltpu.PrefetchScalarGridSpec(
        num_scalar_prefetch=1,                      # true batch size -> SMEM scalar
        grid=(2, nb),                               # (phase, batch tile)
        in_specs=[
            pl.BlockSpec((tb, n_in_p), lambda p, i, b_: (i, 0)),   # x tile
            pl.BlockSpec((n_in_p, f1p), lambda p, i, b_: (0, 0)),  # w1 (DMA once)
            pl.BlockSpec((f1p, f2p), lambda p, i, b_: (0, 0)),     # w2 (DMA once)
            pl.BlockSpec((f2p, ap), lambda p, i, b_: (0, 0)),      # wmu (DMA once)
            pl.BlockSpec((_SUBLANE, wmax), lambda p, i, b_: (0, 0)),  # vec slab
        ],
        out_specs=pl.BlockSpec((tb, ap), lambda p, i, b_: (i, 0)),
        scratch_shapes=[pltpu.VMEM((2, f1p), jnp.float32)],        # BN sum / sumsq
    )

    w_bytes = (n_in_p * f1p + f1p * f2p + f2p * ap) * itemsize
    x_bytes = bp * n_in_p * itemsize
    out_bytes = bp * ap * 4
    vec_bytes = _SUBLANE * wmax * 4
    flops = int(2 * bp * (2 * n_in_p * f1p + f1p * f2p + f2p * ap))  # fc1 runs twice
    cost = pl.CostEstimate(
        flops=flops,
        transcendentals=int(bp * ap),
        bytes_accessed=int(w_bytes + 2 * x_bytes + 2 * out_bytes + vec_bytes),
    )

    # Generous scoped-VMEM limit (v5e default is only 16 MiB); per-step footprint is
    # small because the batch is tiled, so this never approaches v7x's 64 MiB.
    vmem_need = (2 * (w_bytes + tb * n_in_p * itemsize + tb * ap * 4 + vec_bytes)
                 + 2 * f1p * 4 + (4 << 20))
    compiler_params = pltpu.CompilerParams(
        dimension_semantics=("arbitrary", "arbitrary"),
        vmem_limit_bytes=int(min(max(vmem_need, 32 << 20), 60 << 20)),
    )

    call = pl.pallas_call(
        kernel,
        out_shape=jax.ShapeDtypeStruct((bp, ap), jnp.float32),
        grid_spec=grid_spec,
        compiler_params=compiler_params,
        cost_estimate=cost,
    )

    def fwd(state, w1, w2, wmu, vec):
        # Pad batch/feature dims and cast matmul operand dtype OUTSIDE the kernel,
        # all fused under this jit.
        xp = jnp.zeros((bp, n_in_p), mm).at[:b, :n_in].set(state.astype(mm))
        true_b = jnp.full((1,), b, jnp.int32)
        out_pad = call(true_b, xp, w1, w2, wmu, vec)
        return out_pad[:b, :n_actions]

    return jax.jit(fwd)


def actor_forward(state, packed):
    """state: (B, n_inputs) or (n_inputs,) f32. Returns (B, n_actions) (or (n_actions,))."""
    squeeze = state.ndim == 1
    if squeeze:
        state = state[None, :]
    b, n_in = state.shape
    assert n_in == packed["n_inputs"]

    fwd = _build_forward(b, n_in, packed["n_in_pad"], packed["f1_pad"],
                         packed["f2_pad"], packed["a_pad"], packed["wmax"],
                         packed["n_actions"], packed["mm_name"])
    out = fwd(state, packed["w1"], packed["w2"], packed["wmu"], packed["vec"])
    return out[0] if squeeze else out


def init_actor_params(key, n_inputs, fc1_dims, fc2_dims, n_actions):
    """Deterministic init mirroring _init_uniform: U(-f, f) with
    f = 1/sqrt(out_features) for fc1/fc2 (the PyTorch code uses weight.size()[0]),
    f = 0.003 for mu. BatchNorm gamma=1, beta=0."""
    k1, k2, k3, k4, k5, k6 = jax.random.split(key, 6)
    f1 = 1.0 / jnp.sqrt(jnp.float32(fc1_dims))
    f2 = 1.0 / jnp.sqrt(jnp.float32(fc2_dims))
    f3 = 0.003
    return {
        # stored as (in, out) so the kernel does x @ W
        "w1": jax.random.uniform(k1, (n_inputs, fc1_dims), jnp.float32, -f1, f1),
        "b1": jax.random.uniform(k2, (1, fc1_dims), jnp.float32, -f1, f1),
        "gamma1": jnp.ones((1, fc1_dims), jnp.float32),
        "beta1": jnp.zeros((1, fc1_dims), jnp.float32),
        "w2": jax.random.uniform(k3, (fc1_dims, fc2_dims), jnp.float32, -f2, f2),
        "b2": jax.random.uniform(k4, (1, fc2_dims), jnp.float32, -f2, f2),
        "wmu": jax.random.uniform(k5, (fc2_dims, n_actions), jnp.float32, -f3, f3),
        "bmu": jax.random.uniform(k6, (1, n_actions), jnp.float32, -f3, f3),
    }


def _reference_forward(state, p):
    """Pure-JAX reference (matches PyTorch training-mode forward, incl. b1)."""
    h1 = state @ p["w1"] + p["b1"]
    mean = jnp.mean(h1, axis=0, keepdims=True)
    var = jnp.mean((h1 - mean) ** 2, axis=0, keepdims=True)
    h1 = (h1 - mean) / jnp.sqrt(var + _BN_EPS) * p["gamma1"] + p["beta1"]
    h1 = jnp.maximum(h1, 0.0)
    h2 = jnp.maximum(h1 @ p["w2"] + p["b2"], 0.0)
    return jnp.tanh(h2 @ p["wmu"] + p["bmu"])


if __name__ == "__main__":
    # Small shapes consistent with the module.
    B, n_inputs, fc1_dims, fc2_dims, n_actions = 2, 8, 32, 32, 4

    key = jax.random.PRNGKey(0)
    k_state, k_params, k_big = jax.random.split(key, 3)
    state = jax.random.normal(k_state, (B, n_inputs), jnp.float32)
    params = init_actor_params(k_params, n_inputs, fc1_dims, fc2_dims, n_actions)

    ref = _reference_forward(state, params)

    # Exact-semantics f32 matmul path.
    packed_f32 = pack_actor_params(params, matmul_dtype=jnp.float32)
    out_f32 = jax.block_until_ready(actor_forward(state, packed_f32))
    assert out_f32.shape == (B, n_actions)
    assert jnp.allclose(out_f32, ref, atol=1e-5, rtol=1e-5)

    # Default path: bf16 matmul operands (f32 accumulate, f32 BN/ReLU/tanh).
    packed_bf16 = pack_actor_params(params)
    out_bf16 = jax.block_until_ready(actor_forward(state, packed_bf16))
    assert out_bf16.shape == (B, n_actions)
    assert jnp.allclose(out_bf16, ref, atol=5e-2, rtol=5e-2)

    # Larger (training-size) batch exercises the multi-tile grid + 2-phase BN path,
    # including a partially-padded final batch tile.
    B_big = 300
    state_big = jax.random.normal(k_big, (B_big, n_inputs), jnp.float32)
    ref_big = _reference_forward(state_big, params)
    out_big = jax.block_until_ready(actor_forward(state_big, packed_f32))
    assert out_big.shape == (B_big, n_actions)
    assert jnp.allclose(out_big, ref_big, atol=1e-4, rtol=1e-4)

    # Single-state (1-D) act-time path. NOTE: PyTorch BatchNorm1d errors on batch
    # size 1 in training mode; here BN sees var=0 and the result is finite but
    # has no PyTorch reference to compare against.
    out_one = jax.block_until_ready(actor_forward(state[0], packed_bf16))
    assert out_one.shape == (n_actions,)
    assert bool(jnp.all(jnp.isfinite(out_one)))

    print("KERNEL_OK")
</pallas_src>

<mosaic_0001>
module attributes {stable_mosaic.version = 11 : i64} {
  func.func @_actor_kernel(%arg0: i32, %arg1: i32, %arg2: memref<1xi32, #tpu.memory_space<smem>>, %arg3: memref<8x128xf32, #tpu.memory_space<vmem>>, %arg4: memref<128x128xf32, #tpu.memory_space<vmem>>, %arg5: memref<128x128xf32, #tpu.memory_space<vmem>>, %arg6: memref<128x128xf32, #tpu.memory_space<vmem>>, %arg7: memref<8x128xf32, #tpu.memory_space<vmem>>, %arg8: memref<8x128xf32, #tpu.memory_space<vmem>>, %arg9: memref<2x128xf32, #tpu.memory_space<vmem>>) attributes {dimension_semantics = [#tpu.dimension_semantics<arbitrary>, #tpu.dimension_semantics<arbitrary>], iteration_bounds = array<i64: 2, 1>, scalar_prefetch = 1 : i64, scratch_operands = 1 : i64, tpu.core_type = #tpu.core_type<tc>, window_params = [{transform_indices = @transform_0, window_bounds = array<i64: 8, 128>}, {pipeline_mode = #tpu.pipeline_mode<synchronous>, transform_indices = @transform_1, window_bounds = array<i64: 128, 128>}, {pipeline_mode = #tpu.pipeline_mode<synchronous>, transform_indices = @transform_2, window_bounds = array<i64: 128, 128>}, {pipeline_mode = #tpu.pipeline_mode<synchronous>, transform_indices = @transform_3, window_bounds = array<i64: 128, 128>}, {pipeline_mode = #tpu.pipeline_mode<synchronous>, transform_indices = @transform_4, window_bounds = array<i64: 8, 128>}, {transform_indices = @transform_5, window_bounds = array<i64: 8, 128>}]} {
    %c0_i32 = arith.constant 0 : i32
    %0 = arith.cmpi eq, %arg0, %c0_i32 : i32
    %1 = arith.extui %0 : i1 to i32
    %c0_i32_0 = arith.constant 0 : i32
    %2 = arith.cmpi ne, %1, %c0_i32_0 : i32
    scf.if %2 {
      %c0_i32_2 = arith.constant 0 : i32
      %6 = arith.cmpi eq, %arg1, %c0_i32_2 : i32
      %7 = arith.extui %6 : i1 to i32
      %c0_i32_3 = arith.constant 0 : i32
      %8 = arith.cmpi ne, %7, %c0_i32_3 : i32
      scf.if %8 {
        %cst_16 = arith.constant 0.000000e+00 : f32
        %23 = vector.broadcast %cst_16 : f32 to vector<2x128xf32>
        %c0_17 = arith.constant 0 : index
        %c0_18 = arith.constant 0 : index
        %24 = vector.load %arg9[%c0_17, %c0_18] : memref<2x128xf32, #tpu.memory_space<vmem>>, vector<2x128xf32>
        tpu.vector_store %arg9[%c0_17, %c0_18], %23 {strides = array<i32>} : memref<2x128xf32, #tpu.memory_space<vmem>>, vector<2x128xf32>,
      } else {
      }
      %c0 = arith.constant 0 : index
      %c0_4 = arith.constant 0 : index
      %9 = vector.load %arg3[%c0, %c0_4] : memref<8x128xf32, #tpu.memory_space<vmem>>, vector<8x128xf32>
      %c0_5 = arith.constant 0 : index
      %c0_6 = arith.constant 0 : index
      %10 = vector.load %arg4[%c0_5, %c0_6] : memref<128x128xf32, #tpu.memory_space<vmem>>, vector<128x128xf32>
      %cst = arith.constant dense<0.000000e+00> : vector<8x128xf32>
      %11 = tpu.matmul %9, %10, %cst {dimension_numbers = #tpu.dot_dimension_numbers<[1], [0], [0], [1], [0, 0, 1, 1], [], []>} : vector<8x128xf32>, vector<128x128xf32>, vector<8x128xf32> -> vector<8x128xf32>
      %c0_7 = arith.constant 0 : index
      %c0_8 = arith.constant 0 : index
      %12 = vector.load %arg9[%c0_7, %c0_8] : memref<2x128xf32, #tpu.memory_space<vmem>>, vector<1x128xf32>
      %cst_9 = arith.constant dense<0.000000e+00> : vector<128xf32>
      %13 = vector.multi_reduction <add>, %11, %cst_9 [0] : vector<8x128xf32> to vector<128xf32>
      %14 = vector.shape_cast %13 : vector<128xf32> to vector<1x128xf32>
      %15 = arith.addf %12, %14 : vector<1x128xf32>
      %c0_10 = arith.constant 0 : index
      %c0_11 = arith.constant 0 : index
      %16 = vector.load %arg9[%c0_10, %c0_11] : memref<2x128xf32, #tpu.memory_space<vmem>>, vector<1x128xf32>
      tpu.vector_store %arg9[%c0_10, %c0_11], %15 {strides = array<i32>} : memref<2x128xf32, #tpu.memory_space<vmem>>, vector<1x128xf32>,
      %c1 = arith.constant 1 : index
      %c0_12 = arith.constant 0 : index
      %17 = vector.load %arg9[%c1, %c0_12] : memref<2x128xf32, #tpu.memory_space<vmem>>, vector<1x128xf32>
      %18 = arith.mulf %11, %11 : vector<8x128xf32>
      %cst_13 = arith.constant dense<0.000000e+00> : vector<128xf32>
      %19 = vector.multi_reduction <add>, %18, %cst_13 [0] : vector<8x128xf32> to vector<128xf32>
      %20 = vector.shape_cast %19 : vector<128xf32> to vector<1x128xf32>
      %21 = arith.addf %17, %20 : vector<1x128xf32>
      %c1_14 = arith.constant 1 : index
      %c0_15 = arith.constant 0 : index
      %22 = vector.load %arg9[%c1_14, %c0_15] : memref<2x128xf32, #tpu.memory_space<vmem>>, vector<1x128xf32>
      tpu.vector_store %arg9[%c1_14, %c0_15], %21 {strides = array<i32>} : memref<2x128xf32, #tpu.memory_space<vmem>>, vector<1x128xf32>,
    } else {
    }
    %c1_i32 = arith.constant 1 : i32
    %3 = arith.cmpi eq, %arg0, %c1_i32 : i32
    %4 = arith.extui %3 : i1 to i32
    %c0_i32_1 = arith.constant 0 : i32
    %5 = arith.cmpi ne, %4, %c0_i32_1 : i32
    scf.if %5 {
      %c0 = arith.constant 0 : index
      %c0_2 = arith.constant 0 : index
      %6 = vector.load %arg7[%c0, %c0_2] : memref<8x128xf32, #tpu.memory_space<vmem>>, vector<8x128xf32>
      %7 = vector.extract_strided_slice %6 {offsets = [0, 0], sizes = [1, 128], strides = [1, 1]} : vector<8x128xf32> to vector<1x128xf32>
      %8 = vector.extract_strided_slice %6 {offsets = [1, 0], sizes = [1, 128], strides = [1, 1]} : vector<8x128xf32> to vector<1x128xf32>
      %9 = vector.extract_strided_slice %6 {offsets = [2, 0], sizes = [1, 128], strides = [1, 1]} : vector<8x128xf32> to vector<1x128xf32>
      %10 = vector.extract_strided_slice %6 {offsets = [3, 0], sizes = [1, 128], strides = [1, 1]} : vector<8x128xf32> to vector<1x128xf32>
      %c0_3 = arith.constant 0 : index
      %11 = memref.load %arg2[%c0_3] : memref<1xi32, #tpu.memory_space<smem>>
      %12 = arith.sitofp %11 : i32 to f32
      %cst = arith.constant 1.000000e+00 : f32
      %13 = arith.divf %cst, %12 : f32
      %c0_4 = arith.constant 0 : index
      %c0_5 = arith.constant 0 : index
      %14 = vector.load %arg9[%c0_4, %c0_5] : memref<2x128xf32, #tpu.memory_space<vmem>>, vector<1x128xf32>
      %15 = vector.broadcast %13 : f32 to vector<1x128xf32>
      %16 = arith.mulf %14, %15 : vector<1x128xf32>
      %c1 = arith.constant 1 : index
      %c0_6 = arith.constant 0 : index
      %17 = vector.load %arg9[%c1, %c0_6] : memref<2x128xf32, #tpu.memory_space<vmem>>, vector<1x128xf32>
      %18 = vector.broadcast %13 : f32 to vector<1x128xf32>
      %19 = arith.mulf %17, %18 : vector<1x128xf32>
      %20 = arith.mulf %16, %16 : vector<1x128xf32>
      %21 = arith.subf %19, %20 : vector<1x128xf32>
      %cst_7 = arith.constant 0.000000e+00 : f32
      %22 = vector.broadcast %cst_7 : f32 to vector<1x128xf32>
      %23 = arith.maximumf %21, %22 : vector<1x128xf32>
      %cst_8 = arith.constant 9.99999974E-6 : f32
      %24 = vector.broadcast %cst_8 : f32 to vector<1x128xf32>
      %25 = arith.addf %23, %24 : vector<1x128xf32>
      %26 = math.rsqrt %25 : vector<1x128xf32>
      %27 = arith.mulf %26, %7 : vector<1x128xf32>
      %28 = arith.mulf %16, %27 : vector<1x128xf32>
      %29 = arith.subf %8, %28 : vector<1x128xf32>
      %c0_9 = arith.constant 0 : index
      %c0_10 = arith.constant 0 : index
      %30 = vector.load %arg3[%c0_9, %c0_10] : memref<8x128xf32, #tpu.memory_space<vmem>>, vector<8x128xf32>
      %c0_11 = arith.constant 0 : index
      %c0_12 = arith.constant 0 : index
      %31 = vector.load %arg4[%c0_11, %c0_12] : memref<128x128xf32, #tpu.memory_space<vmem>>, vector<128x128xf32>
      %cst_13 = arith.constant dense<0.000000e+00> : vector<8x128xf32>
      %32 = tpu.matmul %30, %31, %cst_13 {dimension_numbers = #tpu.dot_dimension_numbers<[1], [0], [0], [1], [0, 0, 1, 1], [], []>} : vector<8x128xf32>, vector<128x128xf32>, vector<8x128xf32> -> vector<8x128xf32>
      %33 = vector.broadcast %27 : vector<1x128xf32> to vector<8x128xf32>
      %34 = arith.mulf %32, %33 : vector<8x128xf32>
      %35 = vector.broadcast %29 : vector<1x128xf32> to vector<8x128xf32>
      %36 = arith.addf %34, %35 : vector<8x128xf32>
      %cst_14 = arith.constant 0.000000e+00 : f32
      %37 = vector.broadcast %cst_14 : f32 to vector<8x128xf32>
      %38 = arith.maximumf %36, %37 : vector<8x128xf32>
      %c0_15 = arith.constant 0 : index
      %c0_16 = arith.constant 0 : index
      %39 = vector.load %arg5[%c0_15, %c0_16] : memref<128x128xf32, #tpu.memory_space<vmem>>, vector<128x128xf32>
      %cst_17 = arith.constant dense<0.000000e+00> : vector<8x128xf32>
      %40 = tpu.matmul %38, %39, %cst_17 {dimension_numbers = #tpu.dot_dimension_numbers<[1], [0], [0], [1], [0, 0, 1, 1], [], []>} : vector<8x128xf32>, vector<128x128xf32>, vector<8x128xf32> -> vector<8x128xf32>
      %41 = vector.broadcast %9 : vector<1x128xf32> to vector<8x128xf32>
      %42 = arith.addf %40, %41 : vector<8x128xf32>
      %cst_18 = arith.constant 0.000000e+00 : f32
      %43 = vector.broadcast %cst_18 : f32 to vector<8x128xf32>
      %44 = arith.maximumf %42, %43 : vector<8x128xf32>
      %c0_19 = arith.constant 0 : index
      %c0_20 = arith.constant 0 : index
      %45 = vector.load %arg6[%c0_19, %c0_20] : memref<128x128xf32, #tpu.memory_space<vmem>>, vector<128x128xf32>
      %cst_21 = arith.constant dense<0.000000e+00> : vector<8x128xf32>
      %46 = tpu.matmul %44, %45, %cst_21 {dimension_numbers = #tpu.dot_dimension_numbers<[1], [0], [0], [1], [0, 0, 1, 1], [], []>} : vector<8x128xf32>, vector<128x128xf32>, vector<8x128xf32> -> vector<8x128xf32>
      %47 = vector.broadcast %10 : vector<1x128xf32> to vector<8x128xf32>
      %48 = arith.addf %46, %47 : vector<8x128xf32>
      %49 = math.tanh %48 : vector<8x128xf32>
      %c0_22 = arith.constant 0 : index
      %c0_23 = arith.constant 0 : index
      %50 = vector.load %arg8[%c0_22, %c0_23] : memref<8x128xf32, #tpu.memory_space<vmem>>, vector<8x128xf32>
      tpu.vector_store %arg8[%c0_22, %c0_23], %49 {strides = array<i32>} : memref<8x128xf32, #tpu.memory_space<vmem>>, vector<8x128xf32>,
    } else {
    }
    return
  }
  func.func @transform_0(%arg0: i32, %arg1: i32, %arg2: memref<1xi32, #tpu.memory_space<smem>>) -> (i32, i32) {
    %c0_i32 = arith.constant 0 : i32
    %c0_i32_0 = arith.constant 0 : i32
    return %arg1, %c0_i32 : i32, i32
  }
  func.func @transform_1(%arg0: i32, %arg1: i32, %arg2: memref<1xi32, #tpu.memory_space<smem>>) -> (i32, i32) {
    %c0_i32 = arith.constant 0 : i32
    %c0_i32_0 = arith.constant 0 : i32
    %c0_i32_1 = arith.constant 0 : i32
    return %c0_i32, %c0_i32_0 : i32, i32
  }
  func.func @transform_2(%arg0: i32, %arg1: i32, %arg2: memref<1xi32, #tpu.memory_space<smem>>) -> (i32, i32) {
    %c0_i32 = arith.constant 0 : i32
    %c0_i32_0 = arith.constant 0 : i32
    %c0_i32_1 = arith.constant 0 : i32
    return %c0_i32, %c0_i32_0 : i32, i32
  }
  func.func @transform_3(%arg0: i32, %arg1: i32, %arg2: memref<1xi32, #tpu.memory_space<smem>>) -> (i32, i32) {
    %c0_i32 = arith.constant 0 : i32
    %c0_i32_0 = arith.constant 0 : i32
    %c0_i32_1 = arith.constant 0 : i32
    return %c0_i32, %c0_i32_0 : i32, i32
  }
  func.func @transform_4(%arg0: i32, %arg1: i32, %arg2: memref<1xi32, #tpu.memory_space<smem>>) -> (i32, i32) {
    %c0_i32 = arith.constant 0 : i32
    %c0_i32_0 = arith.constant 0 : i32
    %c0_i32_1 = arith.constant 0 : i32
    return %c0_i32, %c0_i32_0 : i32, i32
  }
  func.func @transform_5(%arg0: i32, %arg1: i32, %arg2: memref<1xi32, #tpu.memory_space<smem>>) -> (i32, i32) {
    %c0_i32 = arith.constant 0 : i32
    %c0_i32_0 = arith.constant 0 : i32
    return %arg1, %c0_i32 : i32, i32
  }
}

</mosaic_0001>

<llo_original>
// kernel: fwd.1
$region0: #{fwd.1}
  #allocation0 [shape = 'u32[]', space=smem, size = 0x4, offset = 0x4, fixed_abs, tag = 'smem constant byte address 0x4 - core index']
  #allocation1 [shape = 'u32[144,128]{1,0:T(1,128)}', space=vmem, size = 0x12000, scoped, tag = 'internal scratch']
  #allocation2 [shape = 'f32[2,128]{1,0:T(2,128)}', space=vmem, size = 0x400, scoped, tag = 'scratch operand']
  #allocation3 [shape = 's32[1]{0}', space=sflag, size = 0x4, scoped, tag = 'scoped memory for fwd.1']
  #allocation4 [shape = 's32[1]{0:T(128)S(6)}', space=smem, size = 0x200, scoped, tag = 'prefetched SMEM operand 0']
  %s0 = inlined_call_operand.<no memory space> [shape: s32[1], index: 0, kind: input, shape index: {}]
  %s1 = inlined_call_operand.vmem [shape: f32[8,128], index: 1, kind: input, shape index: {}]
  %s2 = inlined_call_operand.hbm [shape: f32[128,128], index: 2, kind: input, shape index: {}]
  %s3 = inlined_call_operand.hbm [shape: f32[128,128], index: 3, kind: input, shape index: {}]
  %s4 = inlined_call_operand.hbm [shape: f32[128,128], index: 4, kind: input, shape index: {}]
  %s5 = inlined_call_operand.vmem [shape: f32[8,128], index: 5, kind: input, shape index: {}]
  %s6 = inlined_call_operand.vmem [shape: f32[8,128], index: 6, kind: output, shape index: {}]
  %s7 = sld [smem:[#allocation0]]
  $region77: #{fwd.1} parent=0
    _
  %s9 = ssub.s32 1, %s7
  %s10 = scalar_select 0, %s9, %s7
  %11 = sst [smem:[#allocation4]] %s0
  $region1: #{fwd.1} parent=0
    #allocation5 [shape = 'u8[65536]{0}', space=vmem, size = 0x10000, scoped, tag = 'input window, operand 2, single buffered']
    #allocation6 [shape = 's32[2]{0}', space=sflag, size = 0x8, scoped, tag = 'scoped memory for fwd.1']
    #allocation7 [shape = 'u8[65536]{0}', space=vmem, size = 0x10000, scoped, tag = 'input window, operand 3, single buffered']
    #allocation8 [shape = 's32[1]{0}', space=sflag, size = 0x4, scoped, tag = 'scoped memory for fwd.1']
    #allocation9 [shape = 'u8[65536]{0}', space=vmem, size = 0x10000, scoped, tag = 'input window, operand 4, single buffered']
    %12 = vsyncpa [#allocation6], 0
    %13 = vsyncpa [#allocation8], 0
    loop: start=0, step=1, limit=4
    $region2: #{fwd.1} parent=1 // loop_pre_header
      _
    $region3: #{fwd.1} parent=1 // loop_header
      %s15 = sphi 0, %s19
      %p16 = scmp.ge.s32.totalorder %s15, 4
      %s22 = sphi 0, %s34
      %s23 = sphi 0, %s30
      %s24 = sphi 0, %s22
      %s25 = sphi 0, %s23
      %s26 = sphi 0, %s24
      %s27 = sphi 0, %s25
      %s37 = sphi 0, %s39
      %s40 = sphi 0, %s37
      %s41 = sphi 0, %s40
      %s57 = sphi 0, %s41
      %s61 = sphi 0, %s61
      %s63 = sphi 0, %s61
      %s64 = sphi 0, %s63
      %s78 = sphi 0, %s64
      %s82 = sphi 0, %s82
      %s84 = sphi 0, %s82
      %s85 = sphi 0, %s84
      %s99 = sphi 0, %s85
      %s103 = sphi 0, %s103
      %s105 = sphi 0, %s103
      %s106 = sphi 0, %s105
      %s120 = sphi 0, %s106
      %s124 = sphi 0, %s124
      %s126 = sphi 0, %s124
      %s127 = sphi 0, %s126
      %s141 = sphi 0, %s127
      %s147 = sphi 0, %s149
      %s150 = sphi 0, %s147
      %s151 = sphi 0, %s150
      %s167 = sphi 0, %s151
    $region4: #{fwd.1} parent=1 // loop_header_branch
      %18 = sbr.rel (%p16) target = $region8
    $region5: #{fwd.1} parent=1 // loop_body
      %s20 = ssub.s32 %s15, 1
      %s21 = ssub.s32 %s15, 2
      %s28 = sadd.s32 1, %s23
      %p29 = scmp.ge.s32.totalorder %s28, 1
      %s30 = scalar_select %p29, 0, %s28
      %s31 = sadd.s32 1, %s22
      %s32 = scalar_select %p29, %s31, %s22
      %p33 = scmp.ge.s32.totalorder %s32, 2
      %s34 = scalar_select %p33, 0, %s32
      %s35 = ssub.s32 %s23, %s30
      %p36 = scmp.eq.s32.totalorder %s35, 0
      %s38 = sadd.s32 %s37, 1
      %s39 = scalar_select %p36, %s37, %s38
      %p42 = pneg %p36
      %p43 = scmp.eq.s32.totalorder %s15, 1
      %p44 = por %p42, %p43
      %p45 = scmp.ne.s32.totalorder %s37, %s40
      %p46 = scmp.eq.s32.totalorder %s15, 0
      %p47 = por %p45, %p46
      %p48 = scmp.ne.s32.totalorder %s37, %s40
      %p49 = scmp.eq.s32.totalorder %s20, 1
      %p50 = por %p48, %p49
      %p51 = scmp.ne.s32.totalorder %s40, %s41
      %p52 = scmp.eq.s32.totalorder %s20, 0
      %p53 = por %p51, %p52
      %p54 = scmp.ne.s32.totalorder %s40, %s41
      %p55 = scmp.eq.s32.totalorder %s21, 1
      %p56 = por %p54, %p55
      %p58 = scmp.ne.s32.totalorder %s41, %s57
      %p59 = scmp.eq.s32.totalorder %s21, 0
      %p60 = por %p58, %p59
      %s62 = sadd.s32 %s61, 1
      %p65 = scmp.eq.s32.totalorder %s15, 1
      %p66 = scmp.ne.s32.totalorder %s61, %s63
      %p67 = scmp.eq.s32.totalorder %s15, 0
      %p68 = por %p66, %p67
      %p69 = scmp.ne.s32.totalorder %s61, %s63
      %p70 = scmp.eq.s32.totalorder %s20, 1
      %p71 = por %p69, %p70
      %p72 = scmp.ne.s32.totalorder %s63, %s64
      %p73 = scmp.eq.s32.totalorder %s20, 0
      %p74 = por %p72, %p73
      %p75 = scmp.ne.s32.totalorder %s63, %s64
      %p76 = scmp.eq.s32.totalorder %s21, 1
      %p77 = por %p75, %p76
      %p79 = scmp.ne.s32.totalorder %s64, %s78
      %p80 = scmp.eq.s32.totalorder %s21, 0
      %p81 = por %p79, %p80
      %s83 = sadd.s32 %s82, 1
      %p86 = scmp.eq.s32.totalorder %s15, 1
      %p87 = scmp.ne.s32.totalorder %s82, %s84
      %p88 = scmp.eq.s32.totalorder %s15, 0
      %p89 = por %p87, %p88
      %p90 = scmp.ne.s32.totalorder %s82, %s84
      %p91 = scmp.eq.s32.totalorder %s20, 1
      %p92 = por %p90, %p91
      %p93 = scmp.ne.s32.totalorder %s84, %s85
      %p94 = scmp.eq.s32.totalorder %s20, 0
      %p95 = por %p93, %p94
      %p96 = scmp.ne.s32.totalorder %s84, %s85
      %p97 = scmp.eq.s32.totalorder %s21, 1
      %p98 = por %p96, %p97
      %p100 = scmp.ne.s32.totalorder %s85, %s99
      %p101 = scmp.eq.s32.totalorder %s21, 0
      %p102 = por %p100, %p101
      %s104 = sadd.s32 %s103, 1
      %p107 = scmp.eq.s32.totalorder %s15, 1
      %p108 = scmp.ne.s32.totalorder %s103, %s105
      %p109 = scmp.eq.s32.totalorder %s15, 0
      %p110 = por %p108, %p109
      %p111 = scmp.ne.s32.totalorder %s103, %s105
      %p112 = scmp.eq.s32.totalorder %s20, 1
      %p113 = por %p111, %p112
      %p114 = scmp.ne.s32.totalorder %s105, %s106
      %p115 = scmp.eq.s32.totalorder %s20, 0
      %p116 = por %p114, %p115
      %p117 = scmp.ne.s32.totalorder %s105, %s106
      %p118 = scmp.eq.s32.totalorder %s21, 1
      %p119 = por %p117, %p118
      %p121 = scmp.ne.s32.totalorder %s106, %s120
      %p122 = scmp.eq.s32.totalorder %s21, 0
      %p123 = por %p121, %p122
      %s125 = sadd.s32 %s124, 1
      %p128 = scmp.eq.s32.totalorder %s15, 1
      %p129 = scmp.ne.s32.totalorder %s124, %s126
      %p130 = scmp.eq.s32.totalorder %s15, 0
      %p131 = por %p129, %p130
      %p132 = scmp.ne.s32.totalorder %s124, %s126
      %p133 = scmp.eq.s32.totalorder %s20, 1
      %p134 = por %p132, %p133
      %p135 = scmp.ne.s32.totalorder %s126, %s127
      %p136 = scmp.eq.s32.totalorder %s20, 0
      %p137 = por %p135, %p136
      %p138 = scmp.ne.s32.totalorder %s126, %s127
      %p139 = scmp.eq.s32.totalorder %s21, 1
      %p140 = por %p138, %p139
      %p142 = scmp.ne.s32.totalorder %s127, %s141
      %p143 = scmp.eq.s32.totalorder %s21, 0
      %p144 = por %p142, %p143
      %s145 = ssub.s32 %s23, %s30
      %p146 = scmp.eq.s32.totalorder %s145, 0
      %s148 = sadd.s32 %s147, 1
      %s149 = scalar_select %p146, %s147, %s148
      %p152 = pneg %p146
      %p153 = scmp.eq.s32.totalorder %s15, 1
      %p154 = por %p152, %p153
      %p155 = scmp.ne.s32.totalorder %s147, %s150
      %p156 = scmp.eq.s32.totalorder %s15, 0
      %p157 = por %p155, %p156
      %p158 = scmp.ne.s32.totalorder %s147, %s150
      %p159 = scmp.eq.s32.totalorder %s20, 1
      %p160 = por %p158, %p159
      %p161 = scmp.ne.s32.totalorder %s150, %s151
      %p162 = scmp.eq.s32.totalorder %s20, 0
      %p163 = por %p161, %p162
      %p164 = scmp.ne.s32.totalorder %s150, %s151
      %p165 = scmp.eq.s32.totalorder %s21, 1
      %p166 = por %p164, %p165
      %p168 = scmp.ne.s32.totalorder %s151, %s167
      %p169 = scmp.eq.s32.totalorder %s21, 0
      %p170 = por %p168, %p169
      %p171 = scmp.le.s32.totalorder 1, %s15
      %p172 = scmp.lt.s32.totalorder %s15, 3
      %p173 = pnand %p171, %p172
      %p174 = pneg %p173
      // Predicated region
      $region9: #{fwd.1} parent=5 // pred_check
        _
      $region10: #{fwd.1} parent=5 // pred_check_branch
        %176 = sbr.rel (%p173) target = $region12
      $region11: #{fwd.1} parent=5 // pred_region
        %s177 = ssub.s32 %s15, 1
        // Predicated region
        $region13: #{fwd.1} parent=11 // pred_check
          %p178 = pneg %p53
        $region14: #{fwd.1} parent=11 // pred_check_branch
          %180 = sbr.rel (%p178) target = $region16
        $region15: #{fwd.1} parent=11 // pred_region
          %p181 = scmp.lt.s32.totalorder %s25, 0
          %s182 = scalar_select %p181, %s25, 0
          %s183 = smul.addr %s182, 8
          %s184 = scalar_lea.vmem %s1, %s183
        $region16: #{fwd.1} parent=11 // pred_fallthru
          _
        // Predicated region
        $region17: #{fwd.1} parent=11 // pred_check
          %p185 = pneg %p74
        $region18: #{fwd.1} parent=11 // pred_check_branch
          %187 = sbr.rel (%p185) target = $region20
        $region19: #{fwd.1} parent=11 // pred_region
          %s189 = ssub.s32 2048, 2048
          %190 = vsyncadd [#allocation6], %s189
          %s191 = sshll.u32 [#allocation5], 4
          %s192 = int_to_ptr.vmem [resolvable:$true] %s191
          %197 = dma.hbm_to_vmem [thread:$0]  %s2, 2048, %s192, [#allocation6], 128, 128, 8
        $region20: #{fwd.1} parent=11 // pred_fallthru
          _
        // Predicated region
        $region21: #{fwd.1} parent=11 // pred_check
          %p198 = pneg %p95
        $region22: #{fwd.1} parent=11 // pred_check_branch
          %200 = sbr.rel (%p198) target = $region24
        $region23: #{fwd.1} parent=11 // pred_region
          %s202 = ssub.s32 2048, 2048
          %203 = vsyncadd [#allocation8], %s202
          %s204 = sshll.u32 [#allocation7], 4
          %s205 = int_to_ptr.vmem [resolvable:$true] %s204
          %210 = dma.hbm_to_vmem [thread:$0]  %s3, 2048, %s205, [#allocation8], 128, 128, 8
        $region24: #{fwd.1} parent=11 // pred_fallthru
          _
        // Predicated region
        $region25: #{fwd.1} parent=11 // pred_check
          %p211 = pneg %p116
        $region26: #{fwd.1} parent=11 // pred_check_branch
          %213 = sbr.rel (%p211) target = $region28
        $region27: #{fwd.1} parent=11 // pred_region
          %s215 = ssub.s32 2048, 2048
          %216 = vsyncadd [#allocation8], %s215
          %s217 = sshll.u32 [#allocation9], 4
          %s218 = int_to_ptr.vmem [resolvable:$true] %s217
          %223 = dma.hbm_to_vmem [thread:$0]  %s4, 2048, %s218, [#allocation8], 128, 128, 8
        $region28: #{fwd.1} parent=11 // pred_fallthru
          _
        // Predicated region
        $region29: #{fwd.1} parent=11 // pred_check
          %p224 = pneg %p137
        $region30: #{fwd.1} parent=11 // pred_check_branch
          %226 = sbr.rel (%p224) target = $region32
        $region31: #{fwd.1} parent=11 // pred_region
          _
        $region32: #{fwd.1} parent=11 // pred_fallthru
          _
      $region12: #{fwd.1} parent=5 // pred_fallthru
        _
      %p227 = scmp.lt.s32.totalorder %s15, 2
      // Predicated region
      $region33: #{fwd.1} parent=5 // pred_check
        %p228 = pneg %p227
      $region34: #{fwd.1} parent=5 // pred_check_branch
        %230 = sbr.rel (%p228) target = $region36
      $region35: #{fwd.1} parent=5 // pred_region
        _
      $region36: #{fwd.1} parent=5 // pred_fallthru
        _
      %p231 = scmp.le.s32.totalorder 1, %s15
      %p232 = scmp.lt.s32.totalorder %s15, 3
      %p233 = pnand %p231, %p232
      %p234 = pneg %p233
      // Predicated region
      $region37: #{fwd.1} parent=5 // pred_check
        _
      $region38: #{fwd.1} parent=5 // pred_check_branch
        %236 = sbr.rel (%p233) target = $region40
      $region39: #{fwd.1} parent=5 // pred_region
        %s237 = ssub.s32 %s15, 1
        // Predicated region
        $region41: #{fwd.1} parent=39 // pred_check
          %p238 = pneg %p74
        $region42: #{fwd.1} parent=39 // pred_check_branch
          %240 = sbr.rel (%p238) target = $region44
        $region43: #{fwd.1} parent=39 // pred_region
          %241 = dma.done [#allocation6], 2048
        $region44: #{fwd.1} parent=39 // pred_fallthru
          _
        // Predicated region
        $region45: #{fwd.1} parent=39 // pred_check
          %p242 = pneg %p95
        $region46: #{fwd.1} parent=39 // pred_check_branch
          %244 = sbr.rel (%p242) target = $region48
        $region47: #{fwd.1} parent=39 // pred_region
          %245 = dma.done [#allocation8], 2048
        $region48: #{fwd.1} parent=39 // pred_fallthru
          _
        // Predicated region
        $region49: #{fwd.1} parent=39 // pred_check
          %p246 = pneg %p116
        $region50: #{fwd.1} parent=39 // pred_check_branch
          %248 = sbr.rel (%p246) target = $region52
        $region51: #{fwd.1} parent=39 // pred_region
          %249 = dma.done [#allocation8], 2048
        $region52: #{fwd.1} parent=39 // pred_fallthru
          _
        %p250 = scmp.lt.s32.totalorder %s25, 0
        %s251 = scalar_select %p250, %s25, 0
        %s252 = smul.addr %s251, 8
        %s253 = scalar_lea.vmem %s1, %s252
        %p254 = pneg %p53
        %p255 = pneg %p50
        %p256 = pneg %p74
        %p257 = pneg %p71
        %p258 = pneg %p95
        %p259 = pneg %p92
        %p260 = pneg %p116
        %p261 = pneg %p113
        %p262 = pneg %p137
        %p263 = pneg %p134
        %p264 = pneg %p163
        %p265 = pneg %p160
        %p266 = scmp.lt.s32.totalorder %s25, 0
        %s267 = scalar_select %p266, %s25, 0
        %s268 = smul.addr %s267, 8
        %s269 = scalar_lea.vmem %s6, %s268
        %p270 = scmp.lt.s32.totalorder %s25, 0
        %s271 = scalar_select %p270, %s25, 0
        %s272 = smul.addr %s271, 8
        %s273 = scalar_lea.vmem %s1, %s272
        %p274 = scmp.lt.s32.totalorder %s25, 0
        %s275 = scalar_select %p274, %s25, 0
        %s276 = smul.addr %s275, 8
        %s277 = scalar_lea.vmem %s6, %s276
        %p278 = scmp.eq.s32.totalorder %s24, 0
        // Predicated region
        $region53: #{fwd.1} parent=39 // pred_check
          %p279 = pneg %p278
        $region54: #{fwd.1} parent=39 // pred_check_branch
          %281 = sbr.rel (%p279) target = $region56
        $region55: #{fwd.1} parent=39 // pred_region
          %p282 = scmp.eq.s32.totalorder %s25, 0
          // Predicated region
          $region57: #{fwd.1} parent=55 // pred_check
            %p283 = pneg %p282
          $region58: #{fwd.1} parent=55 // pred_check_branch
            %285 = sbr.rel (%p283) target = $region60
          $region59: #{fwd.1} parent=55 // pred_region
            %286 = vst [vmem:[#allocation2] sm:$0x3] 0.0
          $region60: #{fwd.1} parent=55 // pred_fallthru
            _
          %v287 = vld [vmem:[%s273] sm:$0xff]
          %v288 = vld [vmem:[#allocation5] sm:$0xff]
          %v289 = vld [vmem:[#allocation5 + $0x8] sm:$0xff]
          %v290 = vld [vmem:[#allocation5 + $0x10] sm:$0xff]
          %v291 = vld [vmem:[#allocation5 + $0x18] sm:$0xff]
          %v292 = vld [vmem:[#allocation5 + $0x20] sm:$0xff]
          %v293 = vld [vmem:[#allocation5 + $0x28] sm:$0xff]
          %v294 = vld [vmem:[#allocation5 + $0x30] sm:$0xff]
          %v295 = vld [vmem:[#allocation5 + $0x38] sm:$0xff]
          %v296 = vld [vmem:[#allocation5 + $0x40] sm:$0xff]
          %v297 = vld [vmem:[#allocation5 + $0x48] sm:$0xff]
          %v298 = vld [vmem:[#allocation5 + $0x50] sm:$0xff]
          %v299 = vld [vmem:[#allocation5 + $0x58] sm:$0xff]
          %v300 = vld [vmem:[#allocation5 + $0x60] sm:$0xff]
          %v301 = vld [vmem:[#allocation5 + $0x68] sm:$0xff]
          %v302 = vld [vmem:[#allocation5 + $0x70] sm:$0xff]
          %v303 = vld [vmem:[#allocation5 + $0x78] sm:$0xff]
          %304 = vmatprep.subr.mxu0 0.0
          %305 = vmatpush1.msra.mxu0 %v288
          %306 = vmatprep.subr.mxu0 0.0
          %307 = vmatpush1.msra.mxu0 %v289
          %308 = vmatprep.subr.mxu0 0.0
          %309 = vmatpush1.msra.mxu0 %v290
          %310 = vmatprep.subr.mxu0 0.0
          %311 = vmatpush1.msra.mxu0 %v291
          %312 = vmatprep.subr.mxu0 0.0
          %313 = vmatpush1.msra.mxu0 %v292
          %314 = vmatprep.subr.mxu0 0.0
          %315 = vmatpush1.msra.mxu0 %v293
          %316 = vmatprep.subr.mxu0 0.0
          %317 = vmatpush1.msra.mxu0 %v294
          %318 = vmatprep.subr.mxu0 0.0
          %319 = vmatpush1.msra.mxu0 %v295
          %320 = vmatprep.subr.mxu0 0.0
          %321 = vmatpush1.msra.mxu0 %v296
          %322 = vmatprep.subr.mxu0 0.0
          %323 = vmatpush1.msra.mxu0 %v297
          %324 = vmatprep.subr.mxu0 0.0
          %325 = vmatpush1.msra.mxu0 %v298
          %326 = vmatprep.subr.mxu0 0.0
          %327 = vmatpush1.msra.mxu0 %v299
          %328 = vmatprep.subr.mxu0 0.0
          %329 = vmatpush1.msra.mxu0 %v300
          %330 = vmatprep.subr.mxu0 0.0
          %331 = vmatpush1.msra.mxu0 %v301
          %332 = vmatprep.subr.mxu0 0.0
          %333 = vmatpush1.msra.mxu0 %v302
          %334 = vmatprep.subr.mxu0 0.0
          %335 = vmatpush1.msra.mxu0 %v303
          %336 = vmatprep.subr.mxu0 0.0
          %337 = vmatpush1.msra.mxu0 0.0
          %338 = vmatprep.subr.mxu0 0.0
          %339 = vmatpush1.msra.mxu0 0.0
          %340 = vmatprep.subr.mxu0 0.0
          %341 = vmatpush1.msra.mxu0 0.0
          %342 = vmatprep.subr.mxu0 0.0
          %343 = vmatpush1.msra.mxu0 0.0
          %344 = vmatprep.subr.mxu0 0.0
          %345 = vmatpush1.msra.mxu0 0.0
          %346 = vmatprep.subr.mxu0 0.0
          %347 = vmatpush1.msra.mxu0 0.0
          %348 = vmatprep.subr.mxu0 0.0
          %349 = vmatpush1.msra.mxu0 0.0
          %350 = vmatprep.subr.mxu0 0.0
          %351 = vmatpush1.msra.mxu0 0.0
          %352 = vmatprep.subr.mxu0 0.0
          %353 = vmatpush1.msra.mxu0 0.0
          %354 = vmatprep.subr.mxu0 0.0
          %355 = vmatpush1.msra.mxu0 0.0
          %356 = vmatprep.subr.mxu0 0.0
          %357 = vmatpush1.msra.mxu0 0.0
          %358 = vmatprep.subr.mxu0 0.0
          %359 = vmatpush1.msra.mxu0 0.0
          %360 = vmatprep.subr.mxu0 0.0
          %361 = vmatpush1.msra.mxu0 0.0
          %362 = vmatprep.subr.mxu0 0.0
          %363 = vmatpush1.msra.mxu0 0.0
          %364 = vmatprep.subr.mxu0 0.0
          %365 = vmatpush1.msra.mxu0 0.0
          %366 = vmatprep.subr.mxu0 0.0
          %367 = vmatpush1.msra.mxu0 0.0
          %368 = vmatprep.mubr.f32.mxu0 0.0
          %369 = vmatmul.mubr.f32.gmra.mrb[0].mxu0 %v287
          %v370 = vpop.f32.mrb[0].mxu0
          %v371 = vadd.f32 0.0, %v370
          %v372 = vpop.f32.mrb[0].mxu0
          %373 = vdwg.mxu0
          %v374 = vld [vmem:[#allocation2] sm:$0x1]
          %v375 = vrot.slane %v371, 4
          %v376 = vadd.f32 %v371, %v375
          %v377 = vrot.slane %v376, 2
          %v378 = vadd.f32 %v376, %v377
          %v379 = vrot.slane %v378, 1
          %v380 = vadd.f32 %v378, %v379
          %v381 = vadd.f32 %v374, %v380
          %382 = vst [vmem:[#allocation2] sm:$0x1] %v381
          %v383 = vld [vmem:[#allocation2 + $0x1] sm:$0x1]
          %v384 = vmul.f32 %v371, %v371
          %v385 = vrot.slane %v384, 4
          %v386 = vadd.f32 %v384, %v385
          %v387 = vrot.slane %v386, 2
          %v388 = vadd.f32 %v386, %v387
          %v389 = vrot.slane %v388, 1
          %v390 = vadd.f32 %v388, %v389
          %v391 = vadd.f32 %v383, %v390
          %392 = vst [vmem:[#allocation2 + $0x1] sm:$0x1] %v391
        $region56: #{fwd.1} parent=39 // pred_fallthru
          _
        %p393 = scmp.eq.s32.totalorder %s24, 1
        // Predicated region
        $region61: #{fwd.1} parent=39 // pred_check
          %p394 = pneg %p393
        $region62: #{fwd.1} parent=39 // pred_check_branch
          %396 = sbr.rel (%p394) target = $region64
        $region63: #{fwd.1} parent=39 // pred_region
          %v397 = vld [vmem:[%s5] sm:$0xff]
          %s398 = sld [smem:[#allocation4]]
          %s399 = scvt.s32.f32 %s398
          %v400 = vstv %s399
          %v401 = vrcp.pop %v400
          %s402 = vtos %v401
          %v403 = vld [vmem:[#allocation2] sm:$0x1]
          %v404 = vstv %s402
          %v405 = vmul.f32 %v403, %v404
          %v406 = vld [vmem:[#allocation2 + $0x1] sm:$0x1]
          %v407 = vmul.f32 %v406, %v404
          %v408 = vmul.f32 %v405, %v405
          %v409 = vsub.f32 %v407, %v408
          %v410 = vmax.f32 %v409, 0.0
          %v411 = vadd.f32 %v410, 1e-05
          %v412 = vrsqrt.pop %v411
          %v413 = vmul.f32 %v412, %v397
          %v414 = vmul.f32 %v405, %v413
          %v416 = vrot.slane %v414, 7
          %v418 = vsub.f32 %v397, %v416
          %v419 = vld [vmem:[%s273] sm:$0xff]
          %v420 = vld [vmem:[#allocation5] sm:$0xff]
          %v421 = vld [vmem:[#allocation5 + $0x8] sm:$0xff]
          %v422 = vld [vmem:[#allocation5 + $0x10] sm:$0xff]
          %v423 = vld [vmem:[#allocation5 + $0x18] sm:$0xff]
          %v424 = vld [vmem:[#allocation5 + $0x20] sm:$0xff]
          %v425 = vld [vmem:[#allocation5 + $0x28] sm:$0xff]
          %v426 = vld [vmem:[#allocation5 + $0x30] sm:$0xff]
          %v427 = vld [vmem:[#allocation5 + $0x38] sm:$0xff]
          %v428 = vld [vmem:[#allocation5 + $0x40] sm:$0xff]
          %v429 = vld [vmem:[#allocation5 + $0x48] sm:$0xff]
          %v430 = vld [vmem:[#allocation5 + $0x50] sm:$0xff]
          %v431 = vld [vmem:[#allocation5 + $0x58] sm:$0xff]
          %v432 = vld [vmem:[#allocation5 + $0x60] sm:$0xff]
          %v433 = vld [vmem:[#allocation5 + $0x68] sm:$0xff]
          %v434 = vld [vmem:[#allocation5 + $0x70] sm:$0xff]
          %v435 = vld [vmem:[#allocation5 + $0x78] sm:$0xff]
          %436 = vmatprep.subr.mxu0 0.0
          %437 = vmatpush1.msra.mxu0 %v420
          %438 = vmatprep.subr.mxu0 0.0
          %439 = vmatpush1.msra.mxu0 %v421
          %440 = vmatprep.subr.mxu0 0.0
          %441 = vmatpush1.msra.mxu0 %v422
          %442 = vmatprep.subr.mxu0 0.0
          %443 = vmatpush1.msra.mxu0 %v423
          %444 = vmatprep.subr.mxu0 0.0
          %445 = vmatpush1.msra.mxu0 %v424
          %446 = vmatprep.subr.mxu0 0.0
          %447 = vmatpush1.msra.mxu0 %v425
          %448 = vmatprep.subr.mxu0 0.0
          %449 = vmatpush1.msra.mxu0 %v426
          %450 = vmatprep.subr.mxu0 0.0
          %451 = vmatpush1.msra.mxu0 %v427
          %452 = vmatprep.subr.mxu0 0.0
          %453 = vmatpush1.msra.mxu0 %v428
          %454 = vmatprep.subr.mxu0 0.0
          %455 = vmatpush1.msra.mxu0 %v429
          %456 = vmatprep.subr.mxu0 0.0
          %457 = vmatpush1.msra.mxu0 %v430
          %458 = vmatprep.subr.mxu0 0.0
          %459 = vmatpush1.msra.mxu0 %v431
          %460 = vmatprep.subr.mxu0 0.0
          %461 = vmatpush1.msra.mxu0 %v432
          %462 = vmatprep.subr.mxu0 0.0
          %463 = vmatpush1.msra.mxu0 %v433
          %464 = vmatprep.subr.mxu0 0.0
          %465 = vmatpush1.msra.mxu0 %v434
          %466 = vmatprep.subr.mxu0 0.0
          %467 = vmatpush1.msra.mxu0 %v435
          %468 = vmatprep.subr.mxu0 0.0
          %469 = vmatpush1.msra.mxu0 0.0
          %470 = vmatprep.subr.mxu0 0.0
          %471 = vmatpush1.msra.mxu0 0.0
          %472 = vmatprep.subr.mxu0 0.0
          %473 = vmatpush1.msra.mxu0 0.0
          %474 = vmatprep.subr.mxu0 0.0
          %475 = vmatpush1.msra.mxu0 0.0
          %476 = vmatprep.subr.mxu0 0.0
          %477 = vmatpush1.msra.mxu0 0.0
          %478 = vmatprep.subr.mxu0 0.0
          %479 = vmatpush1.msra.mxu0 0.0
          %480 = vmatprep.subr.mxu0 0.0
          %481 = vmatpush1.msra.mxu0 0.0
          %482 = vmatprep.subr.mxu0 0.0
          %483 = vmatpush1.msra.mxu0 0.0
          %484 = vmatprep.subr.mxu0 0.0
          %485 = vmatpush1.msra.mxu0 0.0
          %486 = vmatprep.subr.mxu0 0.0
          %487 = vmatpush1.msra.mxu0 0.0
          %488 = vmatprep.subr.mxu0 0.0
          %489 = vmatpush1.msra.mxu0 0.0
          %490 = vmatprep.subr.mxu0 0.0
          %491 = vmatpush1.msra.mxu0 0.0
          %492 = vmatprep.subr.mxu0 0.0
          %493 = vmatpush1.msra.mxu0 0.0
          %494 = vmatprep.subr.mxu0 0.0
          %495 = vmatpush1.msra.mxu0 0.0
          %496 = vmatprep.subr.mxu0 0.0
          %497 = vmatpush1.msra.mxu0 0.0
          %498 = vmatprep.subr.mxu0 0.0
          %499 = vmatpush1.msra.mxu0 0.0
          %500 = vmatprep.mubr.f32.mxu0 0.0
          %501 = vmatmul.mubr.f32.gmra.mrb[0].mxu0 %v419
          %v502 = vpop.f32.mrb[0].mxu0
          %v503 = vadd.f32 0.0, %v502
          %v504 = vpop.f32.mrb[0].mxu0
          %505 = vdwg.mxu0
          %v506 = vlaneseq
          %v507 = vshrl.u32 %v506, 7
          %v508 = vsub.s32 0, %v507
          %v509 = vrot.slane %v413, %v508
          %v510 = vmul.f32 %v503, %v509
          %v511 = vlaneseq
          %v512 = vshrl.u32 %v511, 7
          %v513 = vsub.s32 1, %v512
          %v514 = vrot.slane %v418, %v513
          %v515 = vadd.f32 %v510, %v514
          %v516 = vmax.f32 %v515, 0.0
          %v517 = vld [vmem:[#allocation7] sm:$0xff]
          %v518 = vld [vmem:[#allocation7 + $0x8] sm:$0xff]
          %v519 = vld [vmem:[#allocation7 + $0x10] sm:$0xff]
          %v520 = vld [vmem:[#allocation7 + $0x18] sm:$0xff]
          %v521 = vld [vmem:[#allocation7 + $0x20] sm:$0xff]
          %v522 = vld [vmem:[#allocation7 + $0x28] sm:$0xff]
          %v523 = vld [vmem:[#allocation7 + $0x30] sm:$0xff]
          %v524 = vld [vmem:[#allocation7 + $0x38] sm:$0xff]
          %v525 = vld [vmem:[#allocation7 + $0x40] sm:$0xff]
          %v526 = vld [vmem:[#allocation7 + $0x48] sm:$0xff]
          %v527 = vld [vmem:[#allocation7 + $0x50] sm:$0xff]
          %v528 = vld [vmem:[#allocation7 + $0x58] sm:$0xff]
          %v529 = vld [vmem:[#allocation7 + $0x60] sm:$0xff]
          %v530 = vld [vmem:[#allocation7 + $0x68] sm:$0xff]
          %v531 = vld [vmem:[#allocation7 + $0x70] sm:$0xff]
          %v532 = vld [vmem:[#allocation7 + $0x78] sm:$0xff]
          %v533 = vlaneseq
          %v534 = vshrl.u32 %v533, 7
          %v535 = vsub.s32 2, %v534
          %v536 = vrot.slane %v397, %v535
          %537 = vmatprep.subr.mxu0 0.0
          %538 = vmatpush1.msra.mxu0 %v517
          %539 = vmatprep.subr.mxu0 0.0
          %540 = vmatpush1.msra.mxu0 %v518
          %541 = vmatprep.subr.mxu0 0.0
          %542 = vmatpush1.msra.mxu0 %v519
          %543 = vmatprep.subr.mxu0 0.0
          %544 = vmatpush1.msra.mxu0 %v520
          %545 = vmatprep.subr.mxu0 0.0
          %546 = vmatpush1.msra.mxu0 %v521
          %547 = vmatprep.subr.mxu0 0.0
          %548 = vmatpush1.msra.mxu0 %v522
          %549 = vmatprep.subr.mxu0 0.0
          %550 = vmatpush1.msra.mxu0 %v523
          %551 = vmatprep.subr.mxu0 0.0
          %552 = vmatpush1.msra.mxu0 %v524
          %553 = vmatprep.subr.mxu0 0.0
          %554 = vmatpush1.msra.mxu0 %v525
          %555 = vmatprep.subr.mxu0 0.0
          %556 = vmatpush1.msra.mxu0 %v526
          %557 = vmatprep.subr.mxu0 0.0
          %558 = vmatpush1.msra.mxu0 %v527
          %559 = vmatprep.subr.mxu0 0.0
          %560 = vmatpush1.msra.mxu0 %v528
          %561 = vmatprep.subr.mxu0 0.0
          %562 = vmatpush1.msra.mxu0 %v529
          %563 = vmatprep.subr.mxu0 0.0
          %564 = vmatpush1.msra.mxu0 %v530
          %565 = vmatprep.subr.mxu0 0.0
          %566 = vmatpush1.msra.mxu0 %v531
          %567 = vmatprep.subr.mxu0 0.0
          %568 = vmatpush1.msra.mxu0 %v532
          %569 = vmatprep.subr.mxu0 0.0
          %570 = vmatpush1.msra.mxu0 0.0
          %571 = vmatprep.subr.mxu0 0.0
          %572 = vmatpush1.msra.mxu0 0.0
          %573 = vmatprep.subr.mxu0 0.0
          %574 = vmatpush1.msra.mxu0 0.0
          %575 = vmatprep.subr.mxu0 0.0
          %576 = vmatpush1.msra.mxu0 0.0
          %577 = vmatprep.subr.mxu0 0.0
          %578 = vmatpush1.msra.mxu0 0.0
          %579 = vmatprep.subr.mxu0 0.0
          %580 = vmatpush1.msra.mxu0 0.0
          %581 = vmatprep.subr.mxu0 0.0
          %582 = vmatpush1.msra.mxu0 0.0
          %583 = vmatprep.subr.mxu0 0.0
          %584 = vmatpush1.msra.mxu0 0.0
          %585 = vmatprep.subr.mxu0 0.0
          %586 = vmatpush1.msra.mxu0 0.0
          %587 = vmatprep.subr.mxu0 0.0
          %588 = vmatpush1.msra.mxu0 0.0
          %589 = vmatprep.subr.mxu0 0.0
          %590 = vmatpush1.msra.mxu0 0.0
          %591 = vmatprep.subr.mxu0 0.0
          %592 = vmatpush1.msra.mxu0 0.0
          %593 = vmatprep.subr.mxu0 0.0
          %594 = vmatpush1.msra.mxu0 0.0
          %595 = vmatprep.subr.mxu0 0.0
          %596 = vmatpush1.msra.mxu0 0.0
          %597 = vmatprep.subr.mxu0 0.0
          %598 = vmatpush1.msra.mxu0 0.0
          %599 = vmatprep.subr.mxu0 0.0
          %600 = vmatpush1.msra.mxu0 0.0
          %601 = vmatprep.mubr.f32.mxu0 0.0
          %602 = vmatmul.mubr.f32.gmra.mrb[0].mxu0 %v516
          %v603 = vpop.f32.mrb[0].mxu0
          %v604 = vadd.f32 %v536, %v603
          %v605 = vpop.f32.mrb[0].mxu0
          %606 = vdwg.mxu0
          %v607 = vmax.f32 %v604, 0.0
          %v608 = vld [vmem:[#allocation9] sm:$0xff]
          %v609 = vld [vmem:[#allocation9 + $0x8] sm:$0xff]
          %v610 = vld [vmem:[#allocation9 + $0x10] sm:$0xff]
          %v611 = vld [vmem:[#allocation9 + $0x18] sm:$0xff]
          %v612 = vld [vmem:[#allocation9 + $0x20] sm:$0xff]
          %v613 = vld [vmem:[#allocation9 + $0x28] sm:$0xff]
          %v614 = vld [vmem:[#allocation9 + $0x30] sm:$0xff]
          %v615 = vld [vmem:[#allocation9 + $0x38] sm:$0xff]
          %v616 = vld [vmem:[#allocation9 + $0x40] sm:$0xff]
          %v617 = vld [vmem:[#allocation9 + $0x48] sm:$0xff]
          %v618 = vld [vmem:[#allocation9 + $0x50] sm:$0xff]
          %v619 = vld [vmem:[#allocation9 + $0x58] sm:$0xff]
          %v620 = vld [vmem:[#allocation9 + $0x60] sm:$0xff]
          %v621 = vld [vmem:[#allocation9 + $0x68] sm:$0xff]
          %v622 = vld [vmem:[#allocation9 + $0x70] sm:$0xff]
          %v623 = vld [vmem:[#allocation9 + $0x78] sm:$0xff]
          %v624 = vlaneseq
          %v625 = vshrl.u32 %v624, 7
          %v626 = vsub.s32 3, %v625
          %v627 = vrot.slane %v397, %v626
          %628 = vmatprep.subr.mxu0 0.0
          %629 = vmatpush1.msra.mxu0 %v608
          %630 = vmatprep.subr.mxu0 0.0
          %631 = vmatpush1.msra.mxu0 %v609
          %632 = vmatprep.subr.mxu0 0.0
          %633 = vmatpush1.msra.mxu0 %v610
          %634 = vmatprep.subr.mxu0 0.0
          %635 = vmatpush1.msra.mxu0 %v611
          %636 = vmatprep.subr.mxu0 0.0
          %637 = vmatpush1.msra.mxu0 %v612
          %638 = vmatprep.subr.mxu0 0.0
          %639 = vmatpush1.msra.mxu0 %v613
          %640 = vmatprep.subr.mxu0 0.0
          %641 = vmatpush1.msra.mxu0 %v614
          %642 = vmatprep.subr.mxu0 0.0
          %643 = vmatpush1.msra.mxu0 %v615
          %644 = vmatprep.subr.mxu0 0.0
          %645 = vmatpush1.msra.mxu0 %v616
          %646 = vmatprep.subr.mxu0 0.0
          %647 = vmatpush1.msra.mxu0 %v617
          %648 = vmatprep.subr.mxu0 0.0
          %649 = vmatpush1.msra.mxu0 %v618
          %650 = vmatprep.subr.mxu0 0.0
          %651 = vmatpush1.msra.mxu0 %v619
          %652 = vmatprep.subr.mxu0 0.0
          %653 = vmatpush1.msra.mxu0 %v620
          %654 = vmatprep.subr.mxu0 0.0
          %655 = vmatpush1.msra.mxu0 %v621
          %656 = vmatprep.subr.mxu0 0.0
          %657 = vmatpush1.msra.mxu0 %v622
          %658 = vmatprep.subr.mxu0 0.0
          %659 = vmatpush1.msra.mxu0 %v623
          %660 = vmatprep.subr.mxu0 0.0
          %661 = vmatpush1.msra.mxu0 0.0
          %662 = vmatprep.subr.mxu0 0.0
          %663 = vmatpush1.msra.mxu0 0.0
          %664 = vmatprep.subr.mxu0 0.0
          %665 = vmatpush1.msra.mxu0 0.0
          %666 = vmatprep.subr.mxu0 0.0
          %667 = vmatpush1.msra.mxu0 0.0
          %668 = vmatprep.subr.mxu0 0.0
          %669 = vmatpush1.msra.mxu0 0.0
          %670 = vmatprep.subr.mxu0 0.0
          %671 = vmatpush1.msra.mxu0 0.0
          %672 = vmatprep.subr.mxu0 0.0
          %673 = vmatpush1.msra.mxu0 0.0
          %674 = vmatprep.subr.mxu0 0.0
          %675 = vmatpush1.msra.mxu0 0.0
          %676 = vmatprep.subr.mxu0 0.0
          %677 = vmatpush1.msra.mxu0 0.0
          %678 = vmatprep.subr.mxu0 0.0
          %679 = vmatpush1.msra.mxu0 0.0
          %680 = vmatprep.subr.mxu0 0.0
          %681 = vmatpush1.msra.mxu0 0.0
          %682 = vmatprep.subr.mxu0 0.0
          %683 = vmatpush1.msra.mxu0 0.0
          %684 = vmatprep.subr.mxu0 0.0
          %685 = vmatpush1.msra.mxu0 0.0
          %686 = vmatprep.subr.mxu0 0.0
          %687 = vmatpush1.msra.mxu0 0.0
          %688 = vmatprep.subr.mxu0 0.0
          %689 = vmatpush1.msra.mxu0 0.0
          %690 = vmatprep.subr.mxu0 0.0
          %691 = vmatpush1.msra.mxu0 0.0
          %692 = vmatprep.mubr.f32.mxu0 0.0
          %693 = vmatmul.mubr.f32.gmra.mrb[0].mxu0 %v607
          %v694 = vpop.f32.mrb[0].mxu0
          %v695 = vadd.f32 %v627, %v694
          %v696 = vpop.f32.mrb[0].mxu0
          %697 = vdwg.mxu0
          %v698 = vtanh.pop %v695
          %699 = vst [vmem:[%s277] sm:$0xff] %v698
        $region64: #{fwd.1} parent=39 // pred_fallthru
          _
        %p700 = scmp.lt.s32.totalorder %s25, 0
        %s701 = scalar_select %p700, %s25, 0
        %s702 = smul.addr %s701, 8
        %s703 = scalar_lea.vmem %s6, %s702
        // Predicated region
        $region65: #{fwd.1} parent=39 // pred_check
          %p704 = pneg %p160
        $region66: #{fwd.1} parent=39 // pred_check_branch
          %706 = sbr.rel (%p704) target = $region68
        $region67: #{fwd.1} parent=39 // pred_region
          _
        $region68: #{fwd.1} parent=39 // pred_fallthru
          _
        // Predicated region
        $region69: #{fwd.1} parent=39 // pred_check
          %p707 = pneg %p160
        $region70: #{fwd.1} parent=39 // pred_check_branch
          %709 = sbr.rel (%p707) target = $region72
        $region71: #{fwd.1} parent=39 // pred_region
          %p710 = scmp.lt.s32.totalorder %s25, 0
          %s711 = scalar_select %p710, %s25, 0
          %s712 = smul.addr %s711, 8
          %s713 = scalar_lea.vmem %s6, %s712
        $region72: #{fwd.1} parent=39 // pred_fallthru
          _
      $region40: #{fwd.1} parent=5 // pred_fallthru
        _
      %p714 = scmp.le.s32.totalorder 2, %s15
      // Predicated region
      $region73: #{fwd.1} parent=5 // pred_check
        %p715 = pneg %p714
      $region74: #{fwd.1} parent=5 // pred_check_branch
        %717 = sbr.rel (%p715) target = $region76
      $region75: #{fwd.1} parent=5 // pred_region
        %s718 = ssub.s32 %s15, 2
      $region76: #{fwd.1} parent=5 // pred_fallthru
        _
    $region6: #{fwd.1} parent=1 // loop_footer
      %s19 = sadd.s32 1, %s15
    $region7: #{fwd.1} parent=1 // loop_footer_branch
      %14 = sbr.rel target = $region3
    $region8: #{fwd.1} parent=1 // loop_exit
      _
    %719 = vsyncpa [#allocation6], 1
    %s720 = scalar_lea.sflag [#allocation6], 1
    %721 = vsyncpa %s720, 1
    %722 = vsyncpa [#allocation8], 1

</llo_original>
